<compile_context>
chip_gen: v7x
topology: tpu7x:2x2x1
jax: 0.10.0
libtpu: 0.0.40
codegen_flags: <defaults>
</compile_context>

<pallas_src>
import jax
import jax.numpy as jnp
from jax.experimental import pallas as pl
from jax.experimental.pallas import tpu as pltpu  # noqa: F401  (kept for TPU-specific tuning hooks)

HIDDEN_DIM = 32
NUM_STATES = 4


def _trace_step_kernel(
    act_ref,    # (B, S+2)  [one_hot(state) | input_bit | prev_output]
    w1_ref,     # (S+2, H)  fused: [embed @ W1a ; W1b ; 0]
    w2_ref,     # (H, H)
    wh_ref,     # (H, S+1)  fused heads: [Wns.T | Wout.T]
    bias_ref,   # (4, H)    rows: b1, b2, [bns|bout|0..], [sigmoid(-phi), ...]
    out_ref,    # out: (B, S+1)  cols 0..S-1 = next-state probs, col S = output prob
):
    S = NUM_STATES
    act = act_ref[...]                                               # (B, S+2)
    bias = bias_ref[...]                                             # (4, H)

    # Fused Linear1 (embedding + bit already folded into w1) + ReLU.
    h = jnp.dot(act, w1_ref[...], preferred_element_type=jnp.float32) + bias[0:1, :]
    h = jnp.maximum(h, 0.0)

    # Linear2 + ReLU.
    h = jnp.dot(h, w2_ref[...], preferred_element_type=jnp.float32) + bias[1:2, :]
    h = jnp.maximum(h, 0.0)                                          # (B, H)

    # Single fused head matmul: next-state logits (cols 0..S-1) + output logit (col S).
    heads = jnp.dot(h, wh_ref[...], preferred_element_type=jnp.float32)
    heads = heads + bias[2:3, :S + 1]                                # (B, S+1)

    B = act.shape[0]
    col = jax.lax.broadcasted_iota(jnp.int32, (B, S + 1), 1)
    is_state = col < S                                               # lane mask

    # Softmax over the first S columns (next-state probabilities).
    m = jnp.max(jnp.where(is_state, heads, -jnp.inf), axis=-1, keepdims=True)
    e = jnp.where(is_state, jnp.exp(jnp.where(is_state, heads - m, 0.0)), 0.0)
    denom = jnp.sum(e, axis=-1, keepdims=True)
    probs = e * pl.reciprocal(denom, approx=True)                    # EUP slot

    # Output head (last column): sigmoid + phi gate on the previous output.
    prob = jax.nn.sigmoid(heads)
    prev = act[:, S + 1:S + 2]                                       # (B, 1)
    gate = bias[3:4, 0:1]                                            # (1, 1) = sigmoid(-phi_gate)
    prob = jnp.where(prev > 0.5, prob * gate, prob)

    # One lane-packed dense store.
    out_ref[...] = jnp.where(is_state, probs, prob)


def prepare_params(params):
    """One-time weight massaging (keep OUT of the per-step hot path)."""
    H, S = HIDDEN_DIM, NUM_STATES

    w1 = params["w1"]                                                # (H, H+1)
    w1a = w1[:, :H].T                                                # (H, H)   state part
    w1b = w1[:, H:].T                                                # (1, H)   input-bit part
    fused_w1 = jnp.concatenate(
        [params["embed"] @ w1a,                                      # (S, H)  embedding folded in
         w1b,                                                        # (1, H)
         jnp.zeros((1, H), jnp.float32)],                            # prev-output row (no-op)
        axis=0)                                                      # (S+2, H)

    w2 = params["w2"].T                                              # (H, H)
    w_heads = jnp.concatenate([params["wns"].T, params["wout"].T], axis=1)   # (H, S+1)

    phi = params["phi_gate"]
    gate = jax.nn.sigmoid(-phi)
    phisig = jax.nn.sigmoid(phi)

    b_heads = jnp.concatenate([params["bns"], params["bout"]], axis=0)       # (S+1,)
    bias_pack = jnp.zeros((4, H), jnp.float32)
    bias_pack = bias_pack.at[0].set(params["b1"])
    bias_pack = bias_pack.at[1].set(params["b2"])
    bias_pack = bias_pack.at[2, :S + 1].set(b_heads)
    bias_pack = bias_pack.at[3, 0].set(gate)

    return dict(fused_w1=fused_w1, w2=w2, w_heads=w_heads,
                bias_pack=bias_pack, phisig=phisig)


@jax.jit
def neural_trace_machine_step(state_idx, input_bit, prev_output, prepared):
    """One batched step of the neural trace machine.

    Args:
      state_idx:   (B,) int32 in [0, NUM_STATES)
      input_bit:   (B,) float32
      prev_output: (B,) float32
      prepared:    output of prepare_params(params)

    Returns:
      next_state_probs (B, NUM_STATES), output_prob (B,), sigmoid(phi_gate) scalar
    """
    B = state_idx.shape[0]
    S = NUM_STATES

    state_oh = jax.nn.one_hot(state_idx, S, dtype=jnp.float32)       # (B, S)
    act = jnp.concatenate(
        [state_oh,
         input_bit.astype(jnp.float32)[:, None],
         prev_output.astype(jnp.float32)[:, None]], axis=1)          # (B, S+2)

    inputs = (act, prepared["fused_w1"], prepared["w2"],
              prepared["w_heads"], prepared["bias_pack"])

    def full_spec(x):
        nd = x.ndim
        return pl.BlockSpec(x.shape, lambda *_: (0,) * nd)

    out_pack = pl.pallas_call(
        _trace_step_kernel,
        grid=(),
        in_specs=[full_spec(x) for x in inputs],
        out_specs=pl.BlockSpec((B, S + 1), lambda *_: (0, 0)),
        out_shape=jax.ShapeDtypeStruct((B, S + 1), jnp.float32),
    )(*inputs)

    probs = out_pack[:, :S]
    out = out_pack[:, S]
    return probs, out, prepared["phisig"]

# TODO(synk): for full traces (run_trace), move the time loop inside the kernel
# (grid=(T,), weights loaded once, state/prev carried in VMEM scratch) instead
# of calling this step per position; sampling (torch.multinomial) stays outside.


def init_params(key):
    """Deterministic parameter init matching the PyTorch module's shapes."""
    H, S = HIDDEN_DIM, NUM_STATES
    ks = jax.random.split(key, 9)

    def lin_init(kw, kb, fan_in, shape_w, shape_b):
        bound = 1.0 / jnp.sqrt(fan_in)
        w = jax.random.uniform(kw, shape_w, jnp.float32, -bound, bound)
        b = jax.random.uniform(kb, shape_b, jnp.float32, -bound, bound)
        return w, b

    embed = jax.random.normal(ks[0], (S, H), jnp.float32)            # nn.Embedding ~ N(0,1)
    w1, b1 = lin_init(ks[1], ks[2], H + 1, (H, H + 1), (H,))         # Linear(H+1 -> H)
    w2, b2 = lin_init(ks[3], ks[4], H, (H, H), (H,))                 # Linear(H -> H)
    wout, bout = lin_init(ks[5], ks[6], H, (1, H), (1,))             # Linear(H -> 1)
    wns, bns = lin_init(ks[7], ks[8], H, (S, H), (S,))               # Linear(H -> S)
    phi_gate = jnp.zeros((), jnp.float32)                            # Parameter(0.0)

    return dict(embed=embed, w1=w1, b1=b1, w2=w2, b2=b2,
                wout=wout, bout=bout, wns=wns, bns=bns, phi_gate=phi_gate)


def reference_step(state_idx, input_bit, prev_output, params):
    """Pure-JAX reference of the PyTorch forward (per-element semantics)."""
    state = params["embed"][state_idx]                               # (B, H)
    x = jnp.concatenate([state, input_bit[:, None]], axis=-1)        # (B, H+1)
    h = jax.nn.relu(x @ params["w1"].T + params["b1"])
    h = jax.nn.relu(h @ params["w2"].T + params["b2"])
    logit = h @ params["wout"].T + params["bout"]
    prob = jax.nn.sigmoid(logit)[:, 0]
    prob = jnp.where(prev_output > 0.5, prob * jax.nn.sigmoid(-params["phi_gate"]), prob)
    ns = h @ params["wns"].T + params["bns"]
    probs = jax.nn.softmax(ns, axis=-1)
    return probs, prob, jax.nn.sigmoid(params["phi_gate"])


if __name__ == "__main__":
    key = jax.random.PRNGKey(0)
    kp, k1, k2, k3 = jax.random.split(key, 4)

    params = init_params(kp)
    prepared = prepare_params(params)   # one-time weight fusion / packing

    B = 8  # batch of machine steps (e.g. a short trace processed in parallel)
    state_idx = jax.random.randint(k1, (B,), 0, NUM_STATES, dtype=jnp.int32)
    input_bit = jax.random.bernoulli(k2, 0.5, (B,)).astype(jnp.float32)
    prev_output = jax.random.uniform(k3, (B,), jnp.float32)

    probs, out, phisig = neural_trace_machine_step(state_idx, input_bit, prev_output, prepared)
    jax.block_until_ready((probs, out, phisig))

    # Correctness check against pure-JAX reference.
    rprobs, rout, rphi = reference_step(state_idx, input_bit, prev_output, params)
    # probs tolerance is loose only because of the EUP approximate reciprocal (~1e-4 rel).
    assert jnp.allclose(probs, rprobs, atol=2e-3), "next_state_probs mismatch"
    assert jnp.allclose(out, rout, atol=1e-5), "output_prob mismatch"
    assert jnp.allclose(phisig, rphi, atol=1e-6), "phi_gate mismatch"

    print("KERNEL_OK")
</pallas_src>

<mosaic_0001>
module attributes {stable_mosaic.version = 11 : i64} {
  func.func @_trace_step_kernel(%arg0: memref<8x6xf32, #tpu.memory_space<vmem>>, %arg1: memref<6x32xf32, #tpu.memory_space<vmem>>, %arg2: memref<32x32xf32, #tpu.memory_space<vmem>>, %arg3: memref<32x5xf32, #tpu.memory_space<vmem>>, %arg4: memref<4x32xf32, #tpu.memory_space<vmem>>, %arg5: memref<8x5xf32, #tpu.memory_space<vmem>>) attributes {dimension_semantics = [], scalar_prefetch = 0 : i64, scratch_operands = 0 : i64, tpu.core_type = #tpu.core_type<tc>} {
    %c0 = arith.constant 0 : index
    %c0_0 = arith.constant 0 : index
    %0 = vector.load %arg0[%c0, %c0_0] : memref<8x6xf32, #tpu.memory_space<vmem>>, vector<8x6xf32>
    %c0_1 = arith.constant 0 : index
    %c0_2 = arith.constant 0 : index
    %1 = vector.load %arg4[%c0_1, %c0_2] : memref<4x32xf32, #tpu.memory_space<vmem>>, vector<4x32xf32>
    %c0_3 = arith.constant 0 : index
    %c0_4 = arith.constant 0 : index
    %2 = vector.load %arg1[%c0_3, %c0_4] : memref<6x32xf32, #tpu.memory_space<vmem>>, vector<6x32xf32>
    %cst = arith.constant dense<0.000000e+00> : vector<8x32xf32>
    %3 = tpu.matmul %0, %2, %cst {dimension_numbers = #tpu.dot_dimension_numbers<[1], [0], [0], [1], [0, 0, 1, 1], [], []>} : vector<8x6xf32>, vector<6x32xf32>, vector<8x32xf32> -> vector<8x32xf32>
    %4 = vector.extract_strided_slice %1 {offsets = [0, 0], sizes = [1, 32], strides = [1, 1]} : vector<4x32xf32> to vector<1x32xf32>
    %5 = vector.broadcast %4 : vector<1x32xf32> to vector<8x32xf32>
    %6 = arith.addf %3, %5 : vector<8x32xf32>
    %cst_5 = arith.constant 0.000000e+00 : f32
    %7 = vector.broadcast %cst_5 : f32 to vector<8x32xf32>
    %8 = arith.maximumf %6, %7 : vector<8x32xf32>
    %c0_6 = arith.constant 0 : index
    %c0_7 = arith.constant 0 : index
    %9 = vector.load %arg2[%c0_6, %c0_7] : memref<32x32xf32, #tpu.memory_space<vmem>>, vector<32x32xf32>
    %cst_8 = arith.constant dense<0.000000e+00> : vector<8x32xf32>
    %10 = tpu.matmul %8, %9, %cst_8 {dimension_numbers = #tpu.dot_dimension_numbers<[1], [0], [0], [1], [0, 0, 1, 1], [], []>} : vector<8x32xf32>, vector<32x32xf32>, vector<8x32xf32> -> vector<8x32xf32>
    %11 = vector.extract_strided_slice %1 {offsets = [1, 0], sizes = [1, 32], strides = [1, 1]} : vector<4x32xf32> to vector<1x32xf32>
    %12 = vector.broadcast %11 : vector<1x32xf32> to vector<8x32xf32>
    %13 = arith.addf %10, %12 : vector<8x32xf32>
    %cst_9 = arith.constant 0.000000e+00 : f32
    %14 = vector.broadcast %cst_9 : f32 to vector<8x32xf32>
    %15 = arith.maximumf %13, %14 : vector<8x32xf32>
    %c0_10 = arith.constant 0 : index
    %c0_11 = arith.constant 0 : index
    %16 = vector.load %arg3[%c0_10, %c0_11] : memref<32x5xf32, #tpu.memory_space<vmem>>, vector<32x5xf32>
    %cst_12 = arith.constant dense<0.000000e+00> : vector<8x5xf32>
    %17 = tpu.matmul %15, %16, %cst_12 {dimension_numbers = #tpu.dot_dimension_numbers<[1], [0], [0], [1], [0, 0, 1, 1], [], []>} : vector<8x32xf32>, vector<32x5xf32>, vector<8x5xf32> -> vector<8x5xf32>
    %18 = vector.extract_strided_slice %1 {offsets = [2, 0], sizes = [1, 5], strides = [1, 1]} : vector<4x32xf32> to vector<1x5xf32>
    %19 = vector.broadcast %18 : vector<1x5xf32> to vector<8x5xf32>
    %20 = arith.addf %17, %19 : vector<8x5xf32>
    %21 = tpu.iota {dimensions = array<i32: 1>} : vector<8x5xi32>
    %c4_i32 = arith.constant 4 : i32
    %22 = vector.broadcast %c4_i32 : i32 to vector<8x5xi32>
    %23 = arith.cmpi slt, %21, %22 : vector<8x5xi32>
    %cst_13 = arith.constant 0xFF800000 : f32
    %24 = vector.broadcast %cst_13 : f32 to vector<8x5xf32>
    %25 = arith.select %23, %20, %24 : vector<8x5xi1>, vector<8x5xf32>
    %cst_14 = arith.constant dense<0xFF800000> : vector<8xf32>
    %26 = vector.multi_reduction <maximumf>, %25, %cst_14 [1] : vector<8x5xf32> to vector<8xf32>
    %27 = vector.shape_cast %26 : vector<8xf32> to vector<8x1xf32>
    %28 = vector.broadcast %27 : vector<8x1xf32> to vector<8x5xf32>
    %29 = arith.subf %20, %28 : vector<8x5xf32>
    %cst_15 = arith.constant 0.000000e+00 : f32
    %30 = vector.broadcast %cst_15 : f32 to vector<8x5xf32>
    %31 = arith.select %23, %29, %30 : vector<8x5xi1>, vector<8x5xf32>
    %32 = math.exp %31 : vector<8x5xf32>
    %cst_16 = arith.constant 0.000000e+00 : f32
    %33 = vector.broadcast %cst_16 : f32 to vector<8x5xf32>
    %34 = arith.select %23, %32, %33 : vector<8x5xi1>, vector<8x5xf32>
    %cst_17 = arith.constant dense<0.000000e+00> : vector<8xf32>
    %35 = vector.multi_reduction <add>, %34, %cst_17 [1] : vector<8x5xf32> to vector<8xf32>
    %36 = vector.shape_cast %35 : vector<8xf32> to vector<8x1xf32>
    %37 = tpu.reciprocal %36 {approx = true} : vector<8x1xf32> -> vector<8x1xf32>
    %38 = vector.broadcast %37 : vector<8x1xf32> to vector<8x5xf32>
    %39 = arith.mulf %34, %38 : vector<8x5xf32>
    %40 = arith.negf %20 : vector<8x5xf32>
    %41 = math.exp %40 : vector<8x5xf32>
    %cst_18 = arith.constant 1.000000e+00 : f32
    %42 = vector.broadcast %cst_18 : f32 to vector<8x5xf32>
    %43 = arith.addf %42, %41 : vector<8x5xf32>
    %44 = arith.divf %42, %43 : vector<8x5xf32>
    %45 = vector.extract_strided_slice %0 {offsets = [0, 5], sizes = [8, 1], strides = [1, 1]} : vector<8x6xf32> to vector<8x1xf32>
    %46 = vector.extract_strided_slice %1 {offsets = [3, 0], sizes = [1, 1], strides = [1, 1]} : vector<4x32xf32> to vector<1x1xf32>
    %cst_19 = arith.constant 5.000000e-01 : f32
    %47 = vector.broadcast %cst_19 : f32 to vector<8x1xf32>
    %48 = arith.cmpf ogt, %45, %47 : vector<8x1xf32>
    %49 = vector.broadcast %46 : vector<1x1xf32> to vector<8x5xf32>
    %50 = arith.mulf %44, %49 : vector<8x5xf32>
    %51 = vector.shape_cast %48 : vector<8x1xi1> to vector<8x1xi1>
    %52 = vector.broadcast %51 : vector<8x1xi1> to vector<8x5xi1>
    %53 = arith.select %52, %50, %44 : vector<8x5xi1>, vector<8x5xf32>
    %54 = arith.select %23, %39, %53 : vector<8x5xi1>, vector<8x5xf32>
    %c0_20 = arith.constant 0 : index
    %c0_21 = arith.constant 0 : index
    %55 = vector.load %arg5[%c0_20, %c0_21] : memref<8x5xf32, #tpu.memory_space<vmem>>, vector<8x5xf32>
    tpu.vector_store %arg5[%c0_20, %c0_21], %54 {strides = array<i32>} : memref<8x5xf32, #tpu.memory_space<vmem>>, vector<8x5xf32>,
    return
  }
}

</mosaic_0001>

<llo_original>
// kernel: neural_trace_machine_step.1
$region0: #{neural_trace_machine_step.1}
  #allocation0 [shape = 'u32[]', space=smem, size = 0x4, offset = 0x4, fixed_abs, tag = 'smem constant byte address 0x4 - core index']
  #allocation1 [shape = 'u32[144,128]{1,0:T(1,128)}', space=vmem, size = 0x12000, scoped, tag = 'internal scratch']
  %s0 = inlined_call_operand.vmem [shape: f32[8,6], index: 0, kind: input, shape index: {}]
  %s1 = inlined_call_operand.vmem [shape: f32[6,32], index: 1, kind: input, shape index: {}]
  %s2 = inlined_call_operand.vmem [shape: f32[32,32], index: 2, kind: input, shape index: {}]
  %s3 = inlined_call_operand.vmem [shape: f32[32,5], index: 3, kind: input, shape index: {}]
  %s4 = inlined_call_operand.vmem [shape: f32[4,32], index: 4, kind: input, shape index: {}]
  %s5 = inlined_call_operand.vmem [shape: f32[8,5], index: 5, kind: output, shape index: {}]
  %s6 = sld [smem:[#allocation0]]
  $region30: #{neural_trace_machine_step.1} parent=0
    _
  %s8 = ssub.s32 1, %s6
  %s9 = scalar_select 0, %s8, %s6
  // Predicated region
  $region2: #{neural_trace_machine_step.1} parent=0 // pred_check
    _
  $region3: #{neural_trace_machine_step.1} parent=0 // pred_check_branch
    %11 = sbr.rel (0) target = $region5
  $region4: #{neural_trace_machine_step.1} parent=0 // pred_region
    _
  $region5: #{neural_trace_machine_step.1} parent=0 // pred_fallthru
    _
  // Predicated region
  $region6: #{neural_trace_machine_step.1} parent=0 // pred_check
    _
  $region7: #{neural_trace_machine_step.1} parent=0 // pred_check_branch
    %13 = sbr.rel (0) target = $region9
  $region8: #{neural_trace_machine_step.1} parent=0 // pred_region
    _
  $region9: #{neural_trace_machine_step.1} parent=0 // pred_fallthru
    _
  // Predicated region
  $region10: #{neural_trace_machine_step.1} parent=0 // pred_check
    _
  $region11: #{neural_trace_machine_step.1} parent=0 // pred_check_branch
    %15 = sbr.rel (0) target = $region13
  $region12: #{neural_trace_machine_step.1} parent=0 // pred_region
    _
  $region13: #{neural_trace_machine_step.1} parent=0 // pred_fallthru
    _
  // Predicated region
  $region14: #{neural_trace_machine_step.1} parent=0 // pred_check
    _
  $region15: #{neural_trace_machine_step.1} parent=0 // pred_check_branch
    %17 = sbr.rel (0) target = $region17
  $region16: #{neural_trace_machine_step.1} parent=0 // pred_region
    _
  $region17: #{neural_trace_machine_step.1} parent=0 // pred_fallthru
    _
  // Predicated region
  $region18: #{neural_trace_machine_step.1} parent=0 // pred_check
    _
  $region19: #{neural_trace_machine_step.1} parent=0 // pred_check_branch
    %19 = sbr.rel (0) target = $region21
  $region20: #{neural_trace_machine_step.1} parent=0 // pred_region
    _
  $region21: #{neural_trace_machine_step.1} parent=0 // pred_fallthru
    _
  %v20 = vld [vmem:[%s0] sm:$0xff]
  %v21 = vld [vmem:[%s4] sm:$0xf]
  %v22 = vld [vmem:[%s1] sm:$0x3f]
  %v23 = vlaneseq
  %v24 = vshrl.u32 %v23, 7
  %v25 = vsub.s32 0, %v24
  %v26 = vrot.slane %v21, %v25
  %vm27 = vcmask 48128
  %v29 = vsel %vm27, %v20, 0
  %vm31 = vcmask 1045504
  %v33 = vsel %vm31, %v22, 0
  %35 = vmatprep.subr.mxu0 0.0
  %36 = vmatpush1.msra.mxu0 %v33
  %37 = vmatprep.subr.mxu0 0.0
  %38 = vmatpush1.msra.mxu0 0.0
  %39 = vmatprep.subr.mxu0 0.0
  %40 = vmatpush1.msra.mxu0 0.0
  %41 = vmatprep.subr.mxu0 0.0
  %42 = vmatpush1.msra.mxu0 0.0
  %43 = vmatprep.subr.mxu0 0.0
  %44 = vmatpush1.msra.mxu0 0.0
  %45 = vmatprep.subr.mxu0 0.0
  %46 = vmatpush1.msra.mxu0 0.0
  %47 = vmatprep.subr.mxu0 0.0
  %48 = vmatpush1.msra.mxu0 0.0
  %49 = vmatprep.subr.mxu0 0.0
  %50 = vmatpush1.msra.mxu0 0.0
  %51 = vmatprep.subr.mxu0 0.0
  %52 = vmatpush1.msra.mxu0 0.0
  %53 = vmatprep.subr.mxu0 0.0
  %54 = vmatpush1.msra.mxu0 0.0
  %55 = vmatprep.subr.mxu0 0.0
  %56 = vmatpush1.msra.mxu0 0.0
  %57 = vmatprep.subr.mxu0 0.0
  %58 = vmatpush1.msra.mxu0 0.0
  %59 = vmatprep.subr.mxu0 0.0
  %60 = vmatpush1.msra.mxu0 0.0
  %61 = vmatprep.subr.mxu0 0.0
  %62 = vmatpush1.msra.mxu0 0.0
  %63 = vmatprep.subr.mxu0 0.0
  %64 = vmatpush1.msra.mxu0 0.0
  %65 = vmatprep.subr.mxu0 0.0
  %66 = vmatpush1.msra.mxu0 0.0
  %67 = vmatprep.subr.mxu0 0.0
  %68 = vmatpush1.msra.mxu0 0.0
  %69 = vmatprep.subr.mxu0 0.0
  %70 = vmatpush1.msra.mxu0 0.0
  %71 = vmatprep.subr.mxu0 0.0
  %72 = vmatpush1.msra.mxu0 0.0
  %73 = vmatprep.subr.mxu0 0.0
  %74 = vmatpush1.msra.mxu0 0.0
  %75 = vmatprep.subr.mxu0 0.0
  %76 = vmatpush1.msra.mxu0 0.0
  %77 = vmatprep.subr.mxu0 0.0
  %78 = vmatpush1.msra.mxu0 0.0
  %79 = vmatprep.subr.mxu0 0.0
  %80 = vmatpush1.msra.mxu0 0.0
  %81 = vmatprep.subr.mxu0 0.0
  %82 = vmatpush1.msra.mxu0 0.0
  %83 = vmatprep.subr.mxu0 0.0
  %84 = vmatpush1.msra.mxu0 0.0
  %85 = vmatprep.subr.mxu0 0.0
  %86 = vmatpush1.msra.mxu0 0.0
  %87 = vmatprep.subr.mxu0 0.0
  %88 = vmatpush1.msra.mxu0 0.0
  %89 = vmatprep.subr.mxu0 0.0
  %90 = vmatpush1.msra.mxu0 0.0
  %91 = vmatprep.subr.mxu0 0.0
  %92 = vmatpush1.msra.mxu0 0.0
  %93 = vmatprep.subr.mxu0 0.0
  %94 = vmatpush1.msra.mxu0 0.0
  %95 = vmatprep.subr.mxu0 0.0
  %96 = vmatpush1.msra.mxu0 0.0
  %97 = vmatprep.subr.mxu0 0.0
  %98 = vmatpush1.msra.mxu0 0.0
  %99 = vmatprep.mubr.f32.mxu0 0.0
  %100 = vmatmul.mubr.f32.gmra.mrb[0].mxu0 %v29
  %v101 = vpop.f32.mrb[0].mxu0
  %v102 = vadd.f32 %v26, %v101
  %v103 = vpop.f32.mrb[0].mxu0
  %104 = vdwg.mxu0
  %v105 = vmax.f32 %v102, 0.0
  %v106 = vld [vmem:[%s2] sm:$0xff]
  %v107 = vld [vmem:[%s2 + $0x8] sm:$0xff]
  %v108 = vld [vmem:[%s2 + $0x10] sm:$0xff]
  %v109 = vld [vmem:[%s2 + $0x18] sm:$0xff]
  %v110 = vlaneseq
  %v111 = vshrl.u32 %v110, 7
  %v112 = vsub.s32 1, %v111
  %v113 = vrot.slane %v21, %v112
  %vm114 = vcmask 261120
  %v116 = vsel %vm114, %v105, 0
  %118 = vmatprep.subr.mxu0 0.0
  %119 = vmatpush1.msra.mxu0 %v106
  %120 = vmatprep.subr.mxu0 0.0
  %121 = vmatpush1.msra.mxu0 %v107
  %122 = vmatprep.subr.mxu0 0.0
  %123 = vmatpush1.msra.mxu0 %v108
  %124 = vmatprep.subr.mxu0 0.0
  %125 = vmatpush1.msra.mxu0 %v109
  %126 = vmatprep.subr.mxu0 0.0
  %127 = vmatpush1.msra.mxu0 0.0
  %128 = vmatprep.subr.mxu0 0.0
  %129 = vmatpush1.msra.mxu0 0.0
  %130 = vmatprep.subr.mxu0 0.0
  %131 = vmatpush1.msra.mxu0 0.0
  %132 = vmatprep.subr.mxu0 0.0
  %133 = vmatpush1.msra.mxu0 0.0
  %134 = vmatprep.subr.mxu0 0.0
  %135 = vmatpush1.msra.mxu0 0.0
  %136 = vmatprep.subr.mxu0 0.0
  %137 = vmatpush1.msra.mxu0 0.0
  %138 = vmatprep.subr.mxu0 0.0
  %139 = vmatpush1.msra.mxu0 0.0
  %140 = vmatprep.subr.mxu0 0.0
  %141 = vmatpush1.msra.mxu0 0.0
  %142 = vmatprep.subr.mxu0 0.0
  %143 = vmatpush1.msra.mxu0 0.0
  %144 = vmatprep.subr.mxu0 0.0
  %145 = vmatpush1.msra.mxu0 0.0
  %146 = vmatprep.subr.mxu0 0.0
  %147 = vmatpush1.msra.mxu0 0.0
  %148 = vmatprep.subr.mxu0 0.0
  %149 = vmatpush1.msra.mxu0 0.0
  %150 = vmatprep.subr.mxu0 0.0
  %151 = vmatpush1.msra.mxu0 0.0
  %152 = vmatprep.subr.mxu0 0.0
  %153 = vmatpush1.msra.mxu0 0.0
  %154 = vmatprep.subr.mxu0 0.0
  %155 = vmatpush1.msra.mxu0 0.0
  %156 = vmatprep.subr.mxu0 0.0
  %157 = vmatpush1.msra.mxu0 0.0
  %158 = vmatprep.subr.mxu0 0.0
  %159 = vmatpush1.msra.mxu0 0.0
  %160 = vmatprep.subr.mxu0 0.0
  %161 = vmatpush1.msra.mxu0 0.0
  %162 = vmatprep.subr.mxu0 0.0
  %163 = vmatpush1.msra.mxu0 0.0
  %164 = vmatprep.subr.mxu0 0.0
  %165 = vmatpush1.msra.mxu0 0.0
  %166 = vmatprep.subr.mxu0 0.0
  %167 = vmatpush1.msra.mxu0 0.0
  %168 = vmatprep.subr.mxu0 0.0
  %169 = vmatpush1.msra.mxu0 0.0
  %170 = vmatprep.subr.mxu0 0.0
  %171 = vmatpush1.msra.mxu0 0.0
  %172 = vmatprep.subr.mxu0 0.0
  %173 = vmatpush1.msra.mxu0 0.0
  %174 = vmatprep.subr.mxu0 0.0
  %175 = vmatpush1.msra.mxu0 0.0
  %176 = vmatprep.subr.mxu0 0.0
  %177 = vmatpush1.msra.mxu0 0.0
  %178 = vmatprep.subr.mxu0 0.0
  %179 = vmatpush1.msra.mxu0 0.0
  %180 = vmatprep.subr.mxu0 0.0
  %181 = vmatpush1.msra.mxu0 0.0
  %182 = vmatprep.mubr.f32.mxu0 0.0
  %183 = vmatmul.mubr.f32.gmra.mrb[0].mxu0 %v116
  %v184 = vpop.f32.mrb[0].mxu0
  %v185 = vadd.f32 %v113, %v184
  %v186 = vpop.f32.mrb[0].mxu0
  %187 = vdwg.mxu0
  %v188 = vmax.f32 %v185, 0.0
  %v189 = vld [vmem:[%s3] sm:$0xff]
  %v190 = vld [vmem:[%s3 + $0x8] sm:$0xff]
  %v191 = vld [vmem:[%s3 + $0x10] sm:$0xff]
  %v192 = vld [vmem:[%s3 + $0x18] sm:$0xff]
  %v193 = vlaneseq
  %v194 = vshrl.u32 %v193, 7
  %v195 = vsub.s32 2, %v194
  %v196 = vrot.slane %v21, %v195
  %v198 = vsel %vm114, %v188, 0
  %200 = vmatprep.subr.mxu0 0.0
  %201 = vmatpush1.msra.mxu0 %v189
  %202 = vmatprep.subr.mxu0 0.0
  %203 = vmatpush1.msra.mxu0 %v190
  %204 = vmatprep.subr.mxu0 0.0
  %205 = vmatpush1.msra.mxu0 %v191
  %206 = vmatprep.subr.mxu0 0.0
  %207 = vmatpush1.msra.mxu0 %v192
  %208 = vmatprep.subr.mxu0 0.0
  %209 = vmatpush1.msra.mxu0 0.0
  %210 = vmatprep.subr.mxu0 0.0
  %211 = vmatpush1.msra.mxu0 0.0
  %212 = vmatprep.subr.mxu0 0.0
  %213 = vmatpush1.msra.mxu0 0.0
  %214 = vmatprep.subr.mxu0 0.0
  %215 = vmatpush1.msra.mxu0 0.0
  %216 = vmatprep.subr.mxu0 0.0
  %217 = vmatpush1.msra.mxu0 0.0
  %218 = vmatprep.subr.mxu0 0.0
  %219 = vmatpush1.msra.mxu0 0.0
  %220 = vmatprep.subr.mxu0 0.0
  %221 = vmatpush1.msra.mxu0 0.0
  %222 = vmatprep.subr.mxu0 0.0
  %223 = vmatpush1.msra.mxu0 0.0
  %224 = vmatprep.subr.mxu0 0.0
  %225 = vmatpush1.msra.mxu0 0.0
  %226 = vmatprep.subr.mxu0 0.0
  %227 = vmatpush1.msra.mxu0 0.0
  %228 = vmatprep.subr.mxu0 0.0
  %229 = vmatpush1.msra.mxu0 0.0
  %230 = vmatprep.subr.mxu0 0.0
  %231 = vmatpush1.msra.mxu0 0.0
  %232 = vmatprep.subr.mxu0 0.0
  %233 = vmatpush1.msra.mxu0 0.0
  %234 = vmatprep.subr.mxu0 0.0
  %235 = vmatpush1.msra.mxu0 0.0
  %236 = vmatprep.subr.mxu0 0.0
  %237 = vmatpush1.msra.mxu0 0.0
  %238 = vmatprep.subr.mxu0 0.0
  %239 = vmatpush1.msra.mxu0 0.0
  %240 = vmatprep.subr.mxu0 0.0
  %241 = vmatpush1.msra.mxu0 0.0
  %242 = vmatprep.subr.mxu0 0.0
  %243 = vmatpush1.msra.mxu0 0.0
  %244 = vmatprep.subr.mxu0 0.0
  %245 = vmatpush1.msra.mxu0 0.0
  %246 = vmatprep.subr.mxu0 0.0
  %247 = vmatpush1.msra.mxu0 0.0
  %248 = vmatprep.subr.mxu0 0.0
  %249 = vmatpush1.msra.mxu0 0.0
  %250 = vmatprep.subr.mxu0 0.0
  %251 = vmatpush1.msra.mxu0 0.0
  %252 = vmatprep.subr.mxu0 0.0
  %253 = vmatpush1.msra.mxu0 0.0
  %254 = vmatprep.subr.mxu0 0.0
  %255 = vmatpush1.msra.mxu0 0.0
  %256 = vmatprep.subr.mxu0 0.0
  %257 = vmatpush1.msra.mxu0 0.0
  %258 = vmatprep.subr.mxu0 0.0
  %259 = vmatpush1.msra.mxu0 0.0
  %260 = vmatprep.subr.mxu0 0.0
  %261 = vmatpush1.msra.mxu0 0.0
  %262 = vmatprep.subr.mxu0 0.0
  %263 = vmatpush1.msra.mxu0 0.0
  %264 = vmatprep.mubr.f32.mxu0 0.0
  %265 = vmatmul.mubr.f32.gmra.mrb[0].mxu0 %v198
  %v266 = vpop.f32.mrb[0].mxu0
  %v267 = vadd.f32 %v196, %v266
  %v268 = vpop.f32.mrb[0].mxu0
  %269 = vdwg.mxu0
  %v270 = vlaneseq
  %v271 = vand.u32 %v270, 127
  %vm272 = vcmp.lt.s32.totalorder %v271, 4
  %v273 = vsel %vm272, %v267, -inf
  %vm274 = vcmask 39936
  %v275 = vsel %vm274, %v273, -inf
  %276 = vmax.xlane.f32.xlu0 %v275
  %v277 = vpop.xlane.xlu0 %276
  %v278 = vsub.f32 %v267, %v277
  %v279 = vsel %vm272, %v278, 0.0
  %v280 = vmul.f32 %v279, 1.442695
  %v281 = vpow.pop %v280
  %v282 = vsel %vm272, %v281, 0.0
  %v283 = vsel %vm274, %v282, 0.0
  %284 = vadd.xlane.f32.xlu0 %v283
  %v285 = vpop.xlane.xlu0 %284
  %v286 = vrcp.pop %v285
  %v287 = vmul.f32 %v282, %v286
  %v288 = vxor.u32 %v267, 2147483648
  %v289 = vmul.f32 %v288, 1.442695
  %v290 = vpow.pop %v289
  %v291 = vadd.f32 %v290, 1.0
  %v292 = vrcp.pop %v291
  %v293 = vmul.f32 1.0, %v292
  %vm294 = vcmp.gt.f32.partialorder %v20, 0.5
  %v296 = vrot.slane %v21, 3
  %s297 = vtos %v296
  %v298 = vstv %s297
  %v300 = vmul.f32 %v293, %v298
  %v301 = vsel %vm294, 1, 0
  %302 = vset.pattern.permute.xlu0 5
  %303 = vperm.xlu0 %302, %v301
  %v304 = vpop.permute.xlu0 %303
  %vm305 = vcmp.eq.s32.totalorder %v304, 1
  %v306 = vsel %vm305, %v300, %v293
  %v307 = vsel %vm272, %v287, %v306
  %308 = vst.msk [vmem:[%s5] sm:$0xff] %vm274, %v307
  // Predicated region
  $region22: #{neural_trace_machine_step.1} parent=0 // pred_check
    _
  $region23: #{neural_trace_machine_step.1} parent=0 // pred_check_branch
    %310 = sbr.rel (0) target = $region25
  $region24: #{neural_trace_machine_step.1} parent=0 // pred_region
    _
  $region25: #{neural_trace_machine_step.1} parent=0 // pred_fallthru
    _
  // Predicated region
  $region26: #{neural_trace_machine_step.1} parent=0 // pred_check
    _
  $region27: #{neural_trace_machine_step.1} parent=0 // pred_check_branch
    %312 = sbr.rel (0) target = $region29
  $region28: #{neural_trace_machine_step.1} parent=0 // pred_region
    _
  $region29: #{neural_trace_machine_step.1} parent=0 // pred_fallthru
    _

</llo_original>
